<compile_context>
chip_gen: v7x
topology: tpu7x:2x2x1
jax: 0.10.0
libtpu: 0.0.40
codegen_flags: <defaults>
</compile_context>

<pallas_src>
import functools

import jax
import jax.numpy as jnp
from jax.experimental import pallas as pl
from jax.experimental.pallas import tpu as pltpu


def _pick_tile(dim: int, candidates) -> int:
    """Largest candidate tile that evenly divides `dim`, else the full dim."""
    for c in candidates:
        if c <= dim and dim % c == 0:
            return c
    return dim


# --------------------------------------------------------------------------
# LayerNorm kernel (per-row, no affine, eps=1e-5, biased variance) — f32 math.
# --------------------------------------------------------------------------
def _layernorm_kernel(x_ref, o_ref):
    x = x_ref[...].astype(jnp.float32)
    mean = jnp.mean(x, axis=-1, keepdims=True)
    centered = x - mean
    var = jnp.mean(centered * centered, axis=-1, keepdims=True)
    o_ref[...] = (centered * jax.lax.rsqrt(var + 1e-5)).astype(o_ref.dtype)


def _layernorm(x, *, out_dtype):
    N, D = x.shape
    tn = _pick_tile(N, (512, 256, 128, 8))
    vmem = 2 * tn * D * (x.dtype.itemsize + jnp.dtype(out_dtype).itemsize) + (1 << 20)
    return pl.pallas_call(
        _layernorm_kernel,
        out_shape=jax.ShapeDtypeStruct((N, D), out_dtype),
        grid=(N // tn,),
        in_specs=[pl.BlockSpec((tn, D), lambda i: (i, 0))],
        out_specs=pl.BlockSpec((tn, D), lambda i: (i, 0)),
        compiler_params=pltpu.CompilerParams(
            dimension_semantics=("parallel",),
            vmem_limit_bytes=min(max(vmem, 4 << 20), 128 << 20),
        ),
    )(x)


# --------------------------------------------------------------------------
# Propagation kernel: for one (N, TD) column slab, run all gnn_layer steps of
# emb <- adj @ emb and sum them.  adj (bf16) stays resident across grid steps.
# --------------------------------------------------------------------------
def _propagate_kernel(adj_ref, emb_ref, out_ref, *, gnn_layer: int):
    adj = adj_ref[...]                                        # (N, N) bf16, resident
    # Layer 0 initializes the accumulator (no zero-fill / extra add).
    cur = jnp.dot(adj, emb_ref[...], preferred_element_type=jnp.float32)
    acc = cur
    # Small static unrolled loop; bf16 operands, f32 accumulation on the MXU.
    for _ in range(gnn_layer - 1):
        cur = jnp.dot(adj, cur.astype(adj.dtype), preferred_element_type=jnp.float32)
        acc = acc + cur
    out_ref[...] = acc.astype(out_ref.dtype)


def _propagate(adj_bf16, emb_bf16, *, gnn_layer: int, out_dtype):
    N, D = emb_bf16.shape
    td = _pick_tile(D, (512, 256, 128))

    adj_bytes = N * N * adj_bf16.dtype.itemsize
    tile_bytes = N * td * (emb_bf16.dtype.itemsize + jnp.dtype(out_dtype).itemsize)
    # adj (x2 for buffering) + double-buffered emb/out tiles + f32 intermediates.
    vmem = 2 * adj_bytes + 2 * tile_bytes + 4 * N * td * 4 + (2 << 20)

    kernel = functools.partial(_propagate_kernel, gnn_layer=gnn_layer)
    return pl.pallas_call(
        kernel,
        out_shape=jax.ShapeDtypeStruct((N, D), out_dtype),
        grid=(D // td,),
        in_specs=[
            pl.BlockSpec((N, N), lambda j: (0, 0)),   # adj: fetched once, VMEM-resident
            pl.BlockSpec((N, td), lambda j: (0, j)),  # embeds column slab
        ],
        out_specs=pl.BlockSpec((N, td), lambda j: (0, j)),
        compiler_params=pltpu.CompilerParams(
            dimension_semantics=("parallel",),        # shards D-slabs across v7x TCs
            vmem_limit_bytes=min(max(vmem, 4 << 20), 128 << 20),
        ),
    )(adj_bf16, emb_bf16)


# --------------------------------------------------------------------------
# Public wrapper mirroring TopoEncoder.forward(adj, embeds, normed).
# --------------------------------------------------------------------------
def topo_encoder(adj, embeds, *, gnn_layer: int = 2, normed: bool = False):
    """adj: [N, N] dense adjacency, embeds: [N, D]. Returns [N, D]."""
    N, D = embeds.shape
    assert adj.shape == (N, N)
    assert gnn_layer >= 0
    out_dtype = embeds.dtype

    if gnn_layer == 0:
        if normed:
            return embeds                      # pure identity; no kernel needed
        return _layernorm(embeds, out_dtype=out_dtype)   # adj never touched

    # Matmul path: bf16 operands for the MXU (halves adj DMA + VMEM footprint).
    adj_bf16 = adj.astype(jnp.bfloat16)
    if normed:
        emb_bf16 = embeds.astype(jnp.bfloat16)
    else:
        emb_bf16 = _layernorm(embeds, out_dtype=jnp.bfloat16)
    return _propagate(adj_bf16, emb_bf16, gnn_layer=gnn_layer, out_dtype=out_dtype)


# --------------------------------------------------------------------------
# Pure-JAX f32 reference mirroring the PyTorch forward.
# --------------------------------------------------------------------------
def topo_encoder_ref(adj, embeds, *, gnn_layer: int = 2, normed: bool = False):
    e = embeds.astype(jnp.float32)
    if not normed:
        mean = jnp.mean(e, axis=-1, keepdims=True)
        var = jnp.mean((e - mean) ** 2, axis=-1, keepdims=True)
        e = (e - mean) * jax.lax.rsqrt(var + 1e-5)
    if gnn_layer == 0:
        return e
    a = adj.astype(jnp.float32)
    final = jnp.zeros_like(e)
    for _ in range(gnn_layer):
        e = a @ e
        final = final + e
    return final


if __name__ == "__main__":
    N = 256        # number of nodes
    LATDIM = 384   # args.latdim (multiple of 128 -> exercises the D-axis grid)
    GNN_LAYER = 2  # args.gnn_layer

    key = jax.random.PRNGKey(0)
    k_adj, k_emb = jax.random.split(key)

    # Row-normalized dense "adjacency" (t.spmm realized as a dense matmul).
    raw = (jax.random.uniform(k_adj, (N, N), jnp.float32) > 0.8).astype(jnp.float32)
    raw = raw + jnp.eye(N, dtype=jnp.float32)
    adj = raw / jnp.sum(raw, axis=-1, keepdims=True)

    embeds = jax.random.normal(k_emb, (N, LATDIM), jnp.float32)

    # Main path: LayerNorm + 2 propagation layers (bf16 MXU, f32 accumulation).
    out = topo_encoder(adj, embeds, gnn_layer=GNN_LAYER, normed=False)
    out = jax.block_until_ready(out)
    ref = topo_encoder_ref(adj, embeds, gnn_layer=GNN_LAYER, normed=False)
    assert out.shape == (N, LATDIM)
    assert jnp.allclose(out, ref, atol=3e-2, rtol=3e-2)   # bf16 matmul tolerance

    # gnn_layer == 0 path: pure LayerNorm kernel (f32, tight tolerance, no adj DMA).
    out0 = jax.block_until_ready(topo_encoder(adj, embeds, gnn_layer=0, normed=False))
    ref0 = topo_encoder_ref(adj, embeds, gnn_layer=0, normed=False)
    assert jnp.allclose(out0, ref0, atol=1e-5, rtol=1e-5)

    print("KERNEL_OK")
</pallas_src>

<mosaic_0001>
module attributes {stable_mosaic.version = 11 : i64} {
  func.func @_layernorm_kernel(%arg0: i32, %arg1: memref<256x384xf32, #tpu.memory_space<vmem>>, %arg2: memref<256x384xbf16, #tpu.memory_space<vmem>>) attributes {dimension_semantics = [#tpu.dimension_semantics<parallel>], iteration_bounds = array<i64: 1>, scalar_prefetch = 0 : i64, scratch_operands = 0 : i64, tpu.core_type = #tpu.core_type<tc>, window_params = [{transform_indices = @transform_0, window_bounds = array<i64: 256, 384>}, {transform_indices = @transform_1, window_bounds = array<i64: 256, 384>}]} {
    %c0 = arith.constant 0 : index
    %c0_0 = arith.constant 0 : index
    %0 = vector.load %arg1[%c0, %c0_0] : memref<256x384xf32, #tpu.memory_space<vmem>>, vector<256x384xf32>
    %cst = arith.constant dense<0.000000e+00> : vector<256xf32>
    %1 = vector.multi_reduction <add>, %0, %cst [1] : vector<256x384xf32> to vector<256xf32>
    %2 = vector.shape_cast %1 : vector<256xf32> to vector<256x1xf32>
    %cst_1 = arith.constant 3.840000e+02 : f32
    %3 = vector.broadcast %cst_1 : f32 to vector<256x1xf32>
    %4 = arith.divf %2, %3 : vector<256x1xf32>
    %5 = vector.broadcast %4 : vector<256x1xf32> to vector<256x384xf32>
    %6 = arith.subf %0, %5 : vector<256x384xf32>
    %7 = arith.mulf %6, %6 : vector<256x384xf32>
    %cst_2 = arith.constant dense<0.000000e+00> : vector<256xf32>
    %8 = vector.multi_reduction <add>, %7, %cst_2 [1] : vector<256x384xf32> to vector<256xf32>
    %9 = vector.shape_cast %8 : vector<256xf32> to vector<256x1xf32>
    %cst_3 = arith.constant 3.840000e+02 : f32
    %10 = vector.broadcast %cst_3 : f32 to vector<256x1xf32>
    %11 = arith.divf %9, %10 : vector<256x1xf32>
    %cst_4 = arith.constant 9.99999974E-6 : f32
    %12 = vector.broadcast %cst_4 : f32 to vector<256x1xf32>
    %13 = arith.addf %11, %12 : vector<256x1xf32>
    %14 = math.rsqrt %13 : vector<256x1xf32>
    %15 = vector.broadcast %14 : vector<256x1xf32> to vector<256x384xf32>
    %16 = arith.mulf %6, %15 : vector<256x384xf32>
    %17 = arith.truncf %16 : vector<256x384xf32> to vector<256x384xbf16>
    %c0_5 = arith.constant 0 : index
    %c0_6 = arith.constant 0 : index
    %18 = vector.load %arg2[%c0_5, %c0_6] : memref<256x384xbf16, #tpu.memory_space<vmem>>, vector<256x384xbf16>
    tpu.vector_store %arg2[%c0_5, %c0_6], %17 {strides = array<i32>} : memref<256x384xbf16, #tpu.memory_space<vmem>>, vector<256x384xbf16>,
    return
  }
  func.func @transform_0(%arg0: i32) -> (i32, i32) {
    %c0_i32 = arith.constant 0 : i32
    %c0_i32_0 = arith.constant 0 : i32
    return %arg0, %c0_i32 : i32, i32
  }
  func.func @transform_1(%arg0: i32) -> (i32, i32) {
    %c0_i32 = arith.constant 0 : i32
    %c0_i32_0 = arith.constant 0 : i32
    return %arg0, %c0_i32 : i32, i32
  }
}

</mosaic_0001>

<llo_original>
// kernel: tpu_custom_call.1
$region0: #{tpu_custom_call.1}
  #allocation0 [shape = 'u32[]', space=smem, size = 0x4, offset = 0x4, fixed_abs, tag = 'smem constant byte address 0x4 - core index']
  #allocation1 [shape = 'u32[144,128]{1,0:T(1,128)}', space=vmem, size = 0x12000, scoped, tag = 'internal scratch']
  %s0 = inlined_call_operand.hbm [shape: f32[256,384], index: 0, kind: input, shape index: {}]
  %s1 = inlined_call_operand.hbm [shape: bf16[256,384], index: 1, kind: output, shape index: {}]
  %s2 = sld [smem:[#allocation0]]
  $region18: #{tpu_custom_call.1} parent=0
    _
  %s4 = ssub.s32 1, %s2
  %s5 = scalar_select 0, %s4, %s2
  $region1: #{tpu_custom_call.1} parent=0
    #allocation2 [shape = 'u8[393216]{0}', space=vmem, size = 0x60000, scoped, tag = 'input window, operand 0, single buffered']
    #allocation3 [shape = 's32[1]{0}', space=sflag, size = 0x4, scoped, tag = 'scoped memory for tpu_custom_call.1']
    #allocation4 [shape = 's32[1]{0}', space=sflag, size = 0x4, scoped, tag = 'scoped memory for tpu_custom_call.1']
    #allocation5 [shape = 'u8[196608]{0}', space=vmem, size = 0x30000, scoped, tag = 'output window, operand 0, single buffered']
    %6 = vsyncpa [#allocation3], 0
    %7 = vsyncpa [#allocation4], 0
    // Predicated region
    $region2: #{tpu_custom_call.1} parent=1 // pred_check
      _
    $region3: #{tpu_custom_call.1} parent=1 // pred_check_branch
      %9 = sbr.rel (0) target = $region5
    $region4: #{tpu_custom_call.1} parent=1 // pred_region
      %s11 = ssub.s32 12288, 12288
      %12 = vsyncadd [#allocation3], %s11
      %s13 = sshll.u32 [#allocation2], 4
      %s14 = int_to_ptr.vmem [resolvable:$true] %s13
      %19 = dma.hbm_to_vmem [thread:$0]  %s0, 12288, %s14, [#allocation3], 384, 384, 24
    $region5: #{tpu_custom_call.1} parent=1 // pred_fallthru
      _
    // Predicated region
    $region6: #{tpu_custom_call.1} parent=1 // pred_check
      _
    $region7: #{tpu_custom_call.1} parent=1 // pred_check_branch
      %21 = sbr.rel (0) target = $region9
    $region8: #{tpu_custom_call.1} parent=1 // pred_region
      %22 = dma.done [#allocation3], 12288
    $region9: #{tpu_custom_call.1} parent=1 // pred_fallthru
      _
    %v23 = vld [vmem:[#allocation2] sm:$0xff]
    %v24 = vld [vmem:[#allocation2 + $0x8] sm:$0xff]
    %v25 = vld [vmem:[#allocation2 + $0x10] sm:$0xff]
    %v26 = vld [vmem:[#allocation2 + $0x18] sm:$0xff]
    %v27 = vld [vmem:[#allocation2 + $0x20] sm:$0xff]
    %v28 = vld [vmem:[#allocation2 + $0x28] sm:$0xff]
    %v29 = vld [vmem:[#allocation2 + $0x30] sm:$0xff]
    %v30 = vld [vmem:[#allocation2 + $0x38] sm:$0xff]
    %v31 = vld [vmem:[#allocation2 + $0x40] sm:$0xff]
    %v32 = vld [vmem:[#allocation2 + $0x48] sm:$0xff]
    %v33 = vld [vmem:[#allocation2 + $0x50] sm:$0xff]
    %v34 = vld [vmem:[#allocation2 + $0x58] sm:$0xff]
    %v35 = vld [vmem:[#allocation2 + $0x60] sm:$0xff]
    %v36 = vld [vmem:[#allocation2 + $0x68] sm:$0xff]
    %v37 = vld [vmem:[#allocation2 + $0x70] sm:$0xff]
    %v38 = vld [vmem:[#allocation2 + $0x78] sm:$0xff]
    %v39 = vld [vmem:[#allocation2 + $0x80] sm:$0xff]
    %v40 = vld [vmem:[#allocation2 + $0x88] sm:$0xff]
    %v41 = vld [vmem:[#allocation2 + $0x90] sm:$0xff]
    %v42 = vld [vmem:[#allocation2 + $0x98] sm:$0xff]
    %v43 = vld [vmem:[#allocation2 + $0xa0] sm:$0xff]
    %v44 = vld [vmem:[#allocation2 + $0xa8] sm:$0xff]
    %v45 = vld [vmem:[#allocation2 + $0xb0] sm:$0xff]
    %v46 = vld [vmem:[#allocation2 + $0xb8] sm:$0xff]
    %v47 = vld [vmem:[#allocation2 + $0xc0] sm:$0xff]
    %v48 = vld [vmem:[#allocation2 + $0xc8] sm:$0xff]
    %v49 = vld [vmem:[#allocation2 + $0xd0] sm:$0xff]
    %v50 = vld [vmem:[#allocation2 + $0xd8] sm:$0xff]
    %v51 = vld [vmem:[#allocation2 + $0xe0] sm:$0xff]
    %v52 = vld [vmem:[#allocation2 + $0xe8] sm:$0xff]
    %v53 = vld [vmem:[#allocation2 + $0xf0] sm:$0xff]
    %v54 = vld [vmem:[#allocation2 + $0xf8] sm:$0xff]
    %v55 = vld [vmem:[#allocation2 + $0x100] sm:$0xff]
    %v56 = vld [vmem:[#allocation2 + $0x108] sm:$0xff]
    %v57 = vld [vmem:[#allocation2 + $0x110] sm:$0xff]
    %v58 = vld [vmem:[#allocation2 + $0x118] sm:$0xff]
    %v59 = vld [vmem:[#allocation2 + $0x120] sm:$0xff]
    %v60 = vld [vmem:[#allocation2 + $0x128] sm:$0xff]
    %v61 = vld [vmem:[#allocation2 + $0x130] sm:$0xff]
    %v62 = vld [vmem:[#allocation2 + $0x138] sm:$0xff]
    %v63 = vld [vmem:[#allocation2 + $0x140] sm:$0xff]
    %v64 = vld [vmem:[#allocation2 + $0x148] sm:$0xff]
    %v65 = vld [vmem:[#allocation2 + $0x150] sm:$0xff]
    %v66 = vld [vmem:[#allocation2 + $0x158] sm:$0xff]
    %v67 = vld [vmem:[#allocation2 + $0x160] sm:$0xff]
    %v68 = vld [vmem:[#allocation2 + $0x168] sm:$0xff]
    %v69 = vld [vmem:[#allocation2 + $0x170] sm:$0xff]
    %v70 = vld [vmem:[#allocation2 + $0x178] sm:$0xff]
    %v71 = vld [vmem:[#allocation2 + $0x180] sm:$0xff]
    %v72 = vld [vmem:[#allocation2 + $0x188] sm:$0xff]
    %v73 = vld [vmem:[#allocation2 + $0x190] sm:$0xff]
    %v74 = vld [vmem:[#allocation2 + $0x198] sm:$0xff]
    %v75 = vld [vmem:[#allocation2 + $0x1a0] sm:$0xff]
    %v76 = vld [vmem:[#allocation2 + $0x1a8] sm:$0xff]
    %v77 = vld [vmem:[#allocation2 + $0x1b0] sm:$0xff]
    %v78 = vld [vmem:[#allocation2 + $0x1b8] sm:$0xff]
    %v79 = vld [vmem:[#allocation2 + $0x1c0] sm:$0xff]
    %v80 = vld [vmem:[#allocation2 + $0x1c8] sm:$0xff]
    %v81 = vld [vmem:[#allocation2 + $0x1d0] sm:$0xff]
    %v82 = vld [vmem:[#allocation2 + $0x1d8] sm:$0xff]
    %v83 = vld [vmem:[#allocation2 + $0x1e0] sm:$0xff]
    %v84 = vld [vmem:[#allocation2 + $0x1e8] sm:$0xff]
    %v85 = vld [vmem:[#allocation2 + $0x1f0] sm:$0xff]
    %v86 = vld [vmem:[#allocation2 + $0x1f8] sm:$0xff]
    %v87 = vld [vmem:[#allocation2 + $0x200] sm:$0xff]
    %v88 = vld [vmem:[#allocation2 + $0x208] sm:$0xff]
    %v89 = vld [vmem:[#allocation2 + $0x210] sm:$0xff]
    %v90 = vld [vmem:[#allocation2 + $0x218] sm:$0xff]
    %v91 = vld [vmem:[#allocation2 + $0x220] sm:$0xff]
    %v92 = vld [vmem:[#allocation2 + $0x228] sm:$0xff]
    %v93 = vld [vmem:[#allocation2 + $0x230] sm:$0xff]
    %v94 = vld [vmem:[#allocation2 + $0x238] sm:$0xff]
    %v95 = vld [vmem:[#allocation2 + $0x240] sm:$0xff]
    %v96 = vld [vmem:[#allocation2 + $0x248] sm:$0xff]
    %v97 = vld [vmem:[#allocation2 + $0x250] sm:$0xff]
    %v98 = vld [vmem:[#allocation2 + $0x258] sm:$0xff]
    %v99 = vld [vmem:[#allocation2 + $0x260] sm:$0xff]
    %v100 = vld [vmem:[#allocation2 + $0x268] sm:$0xff]
    %v101 = vld [vmem:[#allocation2 + $0x270] sm:$0xff]
    %v102 = vld [vmem:[#allocation2 + $0x278] sm:$0xff]
    %v103 = vld [vmem:[#allocation2 + $0x280] sm:$0xff]
    %v104 = vld [vmem:[#allocation2 + $0x288] sm:$0xff]
    %v105 = vld [vmem:[#allocation2 + $0x290] sm:$0xff]
    %v106 = vld [vmem:[#allocation2 + $0x298] sm:$0xff]
    %v107 = vld [vmem:[#allocation2 + $0x2a0] sm:$0xff]
    %v108 = vld [vmem:[#allocation2 + $0x2a8] sm:$0xff]
    %v109 = vld [vmem:[#allocation2 + $0x2b0] sm:$0xff]
    %v110 = vld [vmem:[#allocation2 + $0x2b8] sm:$0xff]
    %v111 = vld [vmem:[#allocation2 + $0x2c0] sm:$0xff]
    %v112 = vld [vmem:[#allocation2 + $0x2c8] sm:$0xff]
    %v113 = vld [vmem:[#allocation2 + $0x2d0] sm:$0xff]
    %v114 = vld [vmem:[#allocation2 + $0x2d8] sm:$0xff]
    %v115 = vld [vmem:[#allocation2 + $0x2e0] sm:$0xff]
    %v116 = vld [vmem:[#allocation2 + $0x2e8] sm:$0xff]
    %v117 = vld [vmem:[#allocation2 + $0x2f0] sm:$0xff]
    %v118 = vld [vmem:[#allocation2 + $0x2f8] sm:$0xff]
    %v119 = vadd.f32 %v23, %v24
    %v120 = vadd.f32 %v119, %v25
    %121 = vadd.xlane.f32.xlu0 %v120
    %v122 = vpop.xlane.xlu0 %121
    %v123 = vadd.f32 %v26, %v27
    %v124 = vadd.f32 %v123, %v28
    %125 = vadd.xlane.f32.xlu0 %v124
    %v126 = vpop.xlane.xlu0 %125
    %v127 = vadd.f32 %v29, %v30
    %v128 = vadd.f32 %v127, %v31
    %129 = vadd.xlane.f32.xlu0 %v128
    %v130 = vpop.xlane.xlu0 %129
    %v131 = vadd.f32 %v32, %v33
    %v132 = vadd.f32 %v131, %v34
    %133 = vadd.xlane.f32.xlu0 %v132
    %v134 = vpop.xlane.xlu0 %133
    %v135 = vadd.f32 %v35, %v36
    %v136 = vadd.f32 %v135, %v37
    %137 = vadd.xlane.f32.xlu0 %v136
    %v138 = vpop.xlane.xlu0 %137
    %v139 = vadd.f32 %v38, %v39
    %v140 = vadd.f32 %v139, %v40
    %141 = vadd.xlane.f32.xlu0 %v140
    %v142 = vpop.xlane.xlu0 %141
    %v143 = vadd.f32 %v41, %v42
    %v144 = vadd.f32 %v143, %v43
    %145 = vadd.xlane.f32.xlu0 %v144
    %v146 = vpop.xlane.xlu0 %145
    %v147 = vadd.f32 %v44, %v45
    %v148 = vadd.f32 %v147, %v46
    %149 = vadd.xlane.f32.xlu0 %v148
    %v150 = vpop.xlane.xlu0 %149
    %v151 = vadd.f32 %v47, %v48
    %v152 = vadd.f32 %v151, %v49
    %153 = vadd.xlane.f32.xlu0 %v152
    %v154 = vpop.xlane.xlu0 %153
    %v155 = vadd.f32 %v50, %v51
    %v156 = vadd.f32 %v155, %v52
    %157 = vadd.xlane.f32.xlu0 %v156
    %v158 = vpop.xlane.xlu0 %157
    %v159 = vadd.f32 %v53, %v54
    %v160 = vadd.f32 %v159, %v55
    %161 = vadd.xlane.f32.xlu0 %v160
    %v162 = vpop.xlane.xlu0 %161
    %v163 = vadd.f32 %v56, %v57
    %v164 = vadd.f32 %v163, %v58
    %165 = vadd.xlane.f32.xlu0 %v164
    %v166 = vpop.xlane.xlu0 %165
    %v167 = vadd.f32 %v59, %v60
    %v168 = vadd.f32 %v167, %v61
    %169 = vadd.xlane.f32.xlu0 %v168
    %v170 = vpop.xlane.xlu0 %169
    %v171 = vadd.f32 %v62, %v63
    %v172 = vadd.f32 %v171, %v64
    %173 = vadd.xlane.f32.xlu0 %v172
    %v174 = vpop.xlane.xlu0 %173
    %v175 = vadd.f32 %v65, %v66
    %v176 = vadd.f32 %v175, %v67
    %177 = vadd.xlane.f32.xlu0 %v176
    %v178 = vpop.xlane.xlu0 %177
    %v179 = vadd.f32 %v68, %v69
    %v180 = vadd.f32 %v179, %v70
    %181 = vadd.xlane.f32.xlu0 %v180
    %v182 = vpop.xlane.xlu0 %181
    %v183 = vadd.f32 %v71, %v72
    %v184 = vadd.f32 %v183, %v73
    %185 = vadd.xlane.f32.xlu0 %v184
    %v186 = vpop.xlane.xlu0 %185
    %v187 = vadd.f32 %v74, %v75
    %v188 = vadd.f32 %v187, %v76
    %189 = vadd.xlane.f32.xlu0 %v188
    %v190 = vpop.xlane.xlu0 %189
    %v191 = vadd.f32 %v77, %v78
    %v192 = vadd.f32 %v191, %v79
    %193 = vadd.xlane.f32.xlu0 %v192
    %v194 = vpop.xlane.xlu0 %193
    %v195 = vadd.f32 %v80, %v81
    %v196 = vadd.f32 %v195, %v82
    %197 = vadd.xlane.f32.xlu0 %v196
    %v198 = vpop.xlane.xlu0 %197
    %v199 = vadd.f32 %v83, %v84
    %v200 = vadd.f32 %v199, %v85
    %201 = vadd.xlane.f32.xlu0 %v200
    %v202 = vpop.xlane.xlu0 %201
    %v203 = vadd.f32 %v86, %v87
    %v204 = vadd.f32 %v203, %v88
    %205 = vadd.xlane.f32.xlu0 %v204
    %v206 = vpop.xlane.xlu0 %205
    %v207 = vadd.f32 %v89, %v90
    %v208 = vadd.f32 %v207, %v91
    %209 = vadd.xlane.f32.xlu0 %v208
    %v210 = vpop.xlane.xlu0 %209
    %v211 = vadd.f32 %v92, %v93
    %v212 = vadd.f32 %v211, %v94
    %213 = vadd.xlane.f32.xlu0 %v212
    %v214 = vpop.xlane.xlu0 %213
    %v215 = vadd.f32 %v95, %v96
    %v216 = vadd.f32 %v215, %v97
    %217 = vadd.xlane.f32.xlu0 %v216
    %v218 = vpop.xlane.xlu0 %217
    %v219 = vadd.f32 %v98, %v99
    %v220 = vadd.f32 %v219, %v100
    %221 = vadd.xlane.f32.xlu0 %v220
    %v222 = vpop.xlane.xlu0 %221
    %v223 = vadd.f32 %v101, %v102
    %v224 = vadd.f32 %v223, %v103
    %225 = vadd.xlane.f32.xlu0 %v224
    %v226 = vpop.xlane.xlu0 %225
    %v227 = vadd.f32 %v104, %v105
    %v228 = vadd.f32 %v227, %v106
    %229 = vadd.xlane.f32.xlu0 %v228
    %v230 = vpop.xlane.xlu0 %229
    %v231 = vadd.f32 %v107, %v108
    %v232 = vadd.f32 %v231, %v109
    %233 = vadd.xlane.f32.xlu0 %v232
    %v234 = vpop.xlane.xlu0 %233
    %v235 = vadd.f32 %v110, %v111
    %v236 = vadd.f32 %v235, %v112
    %237 = vadd.xlane.f32.xlu0 %v236
    %v238 = vpop.xlane.xlu0 %237
    %v239 = vadd.f32 %v113, %v114
    %v240 = vadd.f32 %v239, %v115
    %241 = vadd.xlane.f32.xlu0 %v240
    %v242 = vpop.xlane.xlu0 %241
    %v243 = vadd.f32 %v116, %v117
    %v244 = vadd.f32 %v243, %v118
    %245 = vadd.xlane.f32.xlu0 %v244
    %v246 = vpop.xlane.xlu0 %245
    %v247 = vrcp.pop 384.0
    %v248 = vmul.f32 %v122, %v247
    %v249 = vmul.f32 %v126, %v247
    %v250 = vmul.f32 %v130, %v247
    %v251 = vmul.f32 %v134, %v247
    %v252 = vmul.f32 %v138, %v247
    %v253 = vmul.f32 %v142, %v247
    %v254 = vmul.f32 %v146, %v247
    %v255 = vmul.f32 %v150, %v247
    %v256 = vmul.f32 %v154, %v247
    %v257 = vmul.f32 %v158, %v247
    %v258 = vmul.f32 %v162, %v247
    %v259 = vmul.f32 %v166, %v247
    %v260 = vmul.f32 %v170, %v247
    %v261 = vmul.f32 %v174, %v247
    %v262 = vmul.f32 %v178, %v247
    %v263 = vmul.f32 %v182, %v247
    %v264 = vmul.f32 %v186, %v247
    %v265 = vmul.f32 %v190, %v247
    %v266 = vmul.f32 %v194, %v247
    %v267 = vmul.f32 %v198, %v247
    %v268 = vmul.f32 %v202, %v247
    %v269 = vmul.f32 %v206, %v247
    %v270 = vmul.f32 %v210, %v247
    %v271 = vmul.f32 %v214, %v247
    %v272 = vmul.f32 %v218, %v247
    %v273 = vmul.f32 %v222, %v247
    %v274 = vmul.f32 %v226, %v247
    %v275 = vmul.f32 %v230, %v247
    %v276 = vmul.f32 %v234, %v247
    %v277 = vmul.f32 %v238, %v247
    %v278 = vmul.f32 %v242, %v247
    %v279 = vmul.f32 %v246, %v247
    %v280 = vsub.f32 %v23, %v248
    %v281 = vsub.f32 %v24, %v248
    %v282 = vsub.f32 %v25, %v248
    %v283 = vsub.f32 %v26, %v249
    %v284 = vsub.f32 %v27, %v249
    %v285 = vsub.f32 %v28, %v249
    %v286 = vsub.f32 %v29, %v250
    %v287 = vsub.f32 %v30, %v250
    %v288 = vsub.f32 %v31, %v250
    %v289 = vsub.f32 %v32, %v251
    %v290 = vsub.f32 %v33, %v251
    %v291 = vsub.f32 %v34, %v251
    %v292 = vsub.f32 %v35, %v252
    %v293 = vsub.f32 %v36, %v252
    %v294 = vsub.f32 %v37, %v252
    %v295 = vsub.f32 %v38, %v253
    %v296 = vsub.f32 %v39, %v253
    %v297 = vsub.f32 %v40, %v253
    %v298 = vsub.f32 %v41, %v254
    %v299 = vsub.f32 %v42, %v254
    %v300 = vsub.f32 %v43, %v254
    %v301 = vsub.f32 %v44, %v255
    %v302 = vsub.f32 %v45, %v255
    %v303 = vsub.f32 %v46, %v255
    %v304 = vsub.f32 %v47, %v256
    %v305 = vsub.f32 %v48, %v256
    %v306 = vsub.f32 %v49, %v256
    %v307 = vsub.f32 %v50, %v257
    %v308 = vsub.f32 %v51, %v257
    %v309 = vsub.f32 %v52, %v257
    %v310 = vsub.f32 %v53, %v258
    %v311 = vsub.f32 %v54, %v258
    %v312 = vsub.f32 %v55, %v258
    %v313 = vsub.f32 %v56, %v259
    %v314 = vsub.f32 %v57, %v259
    %v315 = vsub.f32 %v58, %v259
    %v316 = vsub.f32 %v59, %v260
    %v317 = vsub.f32 %v60, %v260
    %v318 = vsub.f32 %v61, %v260
    %v319 = vsub.f32 %v62, %v261
    %v320 = vsub.f32 %v63, %v261
    %v321 = vsub.f32 %v64, %v261
    %v322 = vsub.f32 %v65, %v262
    %v323 = vsub.f32 %v66, %v262
    %v324 = vsub.f32 %v67, %v262
    %v325 = vsub.f32 %v68, %v263
    %v326 = vsub.f32 %v69, %v263
    %v327 = vsub.f32 %v70, %v263
    %v328 = vsub.f32 %v71, %v264
    %v329 = vsub.f32 %v72, %v264
    %v330 = vsub.f32 %v73, %v264
    %v331 = vsub.f32 %v74, %v265
    %v332 = vsub.f32 %v75, %v265
    %v333 = vsub.f32 %v76, %v265
    %v334 = vsub.f32 %v77, %v266
    %v335 = vsub.f32 %v78, %v266
    %v336 = vsub.f32 %v79, %v266
    %v337 = vsub.f32 %v80, %v267
    %v338 = vsub.f32 %v81, %v267
    %v339 = vsub.f32 %v82, %v267
    %v340 = vsub.f32 %v83, %v268
    %v341 = vsub.f32 %v84, %v268
    %v342 = vsub.f32 %v85, %v268
    %v343 = vsub.f32 %v86, %v269
    %v344 = vsub.f32 %v87, %v269
    %v345 = vsub.f32 %v88, %v269
    %v346 = vsub.f32 %v89, %v270
    %v347 = vsub.f32 %v90, %v270
    %v348 = vsub.f32 %v91, %v270
    %v349 = vsub.f32 %v92, %v271
    %v350 = vsub.f32 %v93, %v271
    %v351 = vsub.f32 %v94, %v271
    %v352 = vsub.f32 %v95, %v272
    %v353 = vsub.f32 %v96, %v272
    %v354 = vsub.f32 %v97, %v272
    %v355 = vsub.f32 %v98, %v273
    %v356 = vsub.f32 %v99, %v273
    %v357 = vsub.f32 %v100, %v273
    %v358 = vsub.f32 %v101, %v274
    %v359 = vsub.f32 %v102, %v274
    %v360 = vsub.f32 %v103, %v274
    %v361 = vsub.f32 %v104, %v275
    %v362 = vsub.f32 %v105, %v275
    %v363 = vsub.f32 %v106, %v275
    %v364 = vsub.f32 %v107, %v276
    %v365 = vsub.f32 %v108, %v276
    %v366 = vsub.f32 %v109, %v276
    %v367 = vsub.f32 %v110, %v277
    %v368 = vsub.f32 %v111, %v277
    %v369 = vsub.f32 %v112, %v277
    %v370 = vsub.f32 %v113, %v278
    %v371 = vsub.f32 %v114, %v278
    %v372 = vsub.f32 %v115, %v278
    %v373 = vsub.f32 %v116, %v279
    %v374 = vsub.f32 %v117, %v279
    %v375 = vsub.f32 %v118, %v279
    %v376 = vmul.f32 %v280, %v280
    %v377 = vmul.f32 %v281, %v281
    %v378 = vmul.f32 %v282, %v282
    %v379 = vmul.f32 %v283, %v283
    %v380 = vmul.f32 %v284, %v284
    %v381 = vmul.f32 %v285, %v285
    %v382 = vmul.f32 %v286, %v286
    %v383 = vmul.f32 %v287, %v287
    %v384 = vmul.f32 %v288, %v288
    %v385 = vmul.f32 %v289, %v289
    %v386 = vmul.f32 %v290, %v290
    %v387 = vmul.f32 %v291, %v291
    %v388 = vmul.f32 %v292, %v292
    %v389 = vmul.f32 %v293, %v293
    %v390 = vmul.f32 %v294, %v294
    %v391 = vmul.f32 %v295, %v295
    %v392 = vmul.f32 %v296, %v296
    %v393 = vmul.f32 %v297, %v297
    %v394 = vmul.f32 %v298, %v298
    %v395 = vmul.f32 %v299, %v299
    %v396 = vmul.f32 %v300, %v300
    %v397 = vmul.f32 %v301, %v301
    %v398 = vmul.f32 %v302, %v302
    %v399 = vmul.f32 %v303, %v303
    %v400 = vmul.f32 %v304, %v304
    %v401 = vmul.f32 %v305, %v305
    %v402 = vmul.f32 %v306, %v306
    %v403 = vmul.f32 %v307, %v307
    %v404 = vmul.f32 %v308, %v308
    %v405 = vmul.f32 %v309, %v309
    %v406 = vmul.f32 %v310, %v310
    %v407 = vmul.f32 %v311, %v311
    %v408 = vmul.f32 %v312, %v312
    %v409 = vmul.f32 %v313, %v313
    %v410 = vmul.f32 %v314, %v314
    %v411 = vmul.f32 %v315, %v315
    %v412 = vmul.f32 %v316, %v316
    %v413 = vmul.f32 %v317, %v317
    %v414 = vmul.f32 %v318, %v318
    %v415 = vmul.f32 %v319, %v319
    %v416 = vmul.f32 %v320, %v320
    %v417 = vmul.f32 %v321, %v321
    %v418 = vmul.f32 %v322, %v322
    %v419 = vmul.f32 %v323, %v323
    %v420 = vmul.f32 %v324, %v324
    %v421 = vmul.f32 %v325, %v325
    %v422 = vmul.f32 %v326, %v326
    %v423 = vmul.f32 %v327, %v327
    %v424 = vmul.f32 %v328, %v328
    %v425 = vmul.f32 %v329, %v329
    %v426 = vmul.f32 %v330, %v330
    %v427 = vmul.f32 %v331, %v331
    %v428 = vmul.f32 %v332, %v332
    %v429 = vmul.f32 %v333, %v333
    %v430 = vmul.f32 %v334, %v334
    %v431 = vmul.f32 %v335, %v335
    %v432 = vmul.f32 %v336, %v336
    %v433 = vmul.f32 %v337, %v337
    %v434 = vmul.f32 %v338, %v338
    %v435 = vmul.f32 %v339, %v339
    %v436 = vmul.f32 %v340, %v340
    %v437 = vmul.f32 %v341, %v341
    %v438 = vmul.f32 %v342, %v342
    %v439 = vmul.f32 %v343, %v343
    %v440 = vmul.f32 %v344, %v344
    %v441 = vmul.f32 %v345, %v345
    %v442 = vmul.f32 %v346, %v346
    %v443 = vmul.f32 %v347, %v347
    %v444 = vmul.f32 %v348, %v348
    %v445 = vmul.f32 %v349, %v349
    %v446 = vmul.f32 %v350, %v350
    %v447 = vmul.f32 %v351, %v351
    %v448 = vmul.f32 %v352, %v352
    %v449 = vmul.f32 %v353, %v353
    %v450 = vmul.f32 %v354, %v354
    %v451 = vmul.f32 %v355, %v355
    %v452 = vmul.f32 %v356, %v356
    %v453 = vmul.f32 %v357, %v357
    %v454 = vmul.f32 %v358, %v358
    %v455 = vmul.f32 %v359, %v359
    %v456 = vmul.f32 %v360, %v360
    %v457 = vmul.f32 %v361, %v361
    %v458 = vmul.f32 %v362, %v362
    %v459 = vmul.f32 %v363, %v363
    %v460 = vmul.f32 %v364, %v364
    %v461 = vmul.f32 %v365, %v365
    %v462 = vmul.f32 %v366, %v366
    %v463 = vmul.f32 %v367, %v367
    %v464 = vmul.f32 %v368, %v368
    %v465 = vmul.f32 %v369, %v369
    %v466 = vmul.f32 %v370, %v370
    %v467 = vmul.f32 %v371, %v371
    %v468 = vmul.f32 %v372, %v372
    %v469 = vmul.f32 %v373, %v373
    %v470 = vmul.f32 %v374, %v374
    %v471 = vmul.f32 %v375, %v375
    %v472 = vadd.f32 %v376, %v377
    %v473 = vadd.f32 %v472, %v378
    %474 = vadd.xlane.f32.xlu0 %v473
    %v475 = vpop.xlane.xlu0 %474
    %v476 = vadd.f32 %v379, %v380
    %v477 = vadd.f32 %v476, %v381
    %478 = vadd.xlane.f32.xlu0 %v477
    %v479 = vpop.xlane.xlu0 %478
    %v480 = vadd.f32 %v382, %v383
    %v481 = vadd.f32 %v480, %v384
    %482 = vadd.xlane.f32.xlu0 %v481
    %v483 = vpop.xlane.xlu0 %482
    %v484 = vadd.f32 %v385, %v386
    %v485 = vadd.f32 %v484, %v387
    %486 = vadd.xlane.f32.xlu0 %v485
    %v487 = vpop.xlane.xlu0 %486
    %v488 = vadd.f32 %v388, %v389
    %v489 = vadd.f32 %v488, %v390
    %490 = vadd.xlane.f32.xlu0 %v489
    %v491 = vpop.xlane.xlu0 %490
    %v492 = vadd.f32 %v391, %v392
    %v493 = vadd.f32 %v492, %v393
    %494 = vadd.xlane.f32.xlu0 %v493
    %v495 = vpop.xlane.xlu0 %494
    %v496 = vadd.f32 %v394, %v395
    %v497 = vadd.f32 %v496, %v396
    %498 = vadd.xlane.f32.xlu0 %v497
    %v499 = vpop.xlane.xlu0 %498
    %v500 = vadd.f32 %v397, %v398
    %v501 = vadd.f32 %v500, %v399
    %502 = vadd.xlane.f32.xlu0 %v501
    %v503 = vpop.xlane.xlu0 %502
    %v504 = vadd.f32 %v400, %v401
    %v505 = vadd.f32 %v504, %v402
    %506 = vadd.xlane.f32.xlu0 %v505
    %v507 = vpop.xlane.xlu0 %506
    %v508 = vadd.f32 %v403, %v404
    %v509 = vadd.f32 %v508, %v405
    %510 = vadd.xlane.f32.xlu0 %v509
    %v511 = vpop.xlane.xlu0 %510
    %v512 = vadd.f32 %v406, %v407
    %v513 = vadd.f32 %v512, %v408
    %514 = vadd.xlane.f32.xlu0 %v513
    %v515 = vpop.xlane.xlu0 %514
    %v516 = vadd.f32 %v409, %v410
    %v517 = vadd.f32 %v516, %v411
    %518 = vadd.xlane.f32.xlu0 %v517
    %v519 = vpop.xlane.xlu0 %518
    %v520 = vadd.f32 %v412, %v413
    %v521 = vadd.f32 %v520, %v414
    %522 = vadd.xlane.f32.xlu0 %v521
    %v523 = vpop.xlane.xlu0 %522
    %v524 = vadd.f32 %v415, %v416
    %v525 = vadd.f32 %v524, %v417
    %526 = vadd.xlane.f32.xlu0 %v525
    %v527 = vpop.xlane.xlu0 %526
    %v528 = vadd.f32 %v418, %v419
    %v529 = vadd.f32 %v528, %v420
    %530 = vadd.xlane.f32.xlu0 %v529
    %v531 = vpop.xlane.xlu0 %530
    %v532 = vadd.f32 %v421, %v422
    %v533 = vadd.f32 %v532, %v423
    %534 = vadd.xlane.f32.xlu0 %v533
    %v535 = vpop.xlane.xlu0 %534
    %v536 = vadd.f32 %v424, %v425
    %v537 = vadd.f32 %v536, %v426
    %538 = vadd.xlane.f32.xlu0 %v537
    %v539 = vpop.xlane.xlu0 %538
    %v540 = vadd.f32 %v427, %v428
    %v541 = vadd.f32 %v540, %v429
    %542 = vadd.xlane.f32.xlu0 %v541
    %v543 = vpop.xlane.xlu0 %542
    %v544 = vadd.f32 %v430, %v431
    %v545 = vadd.f32 %v544, %v432
    %546 = vadd.xlane.f32.xlu0 %v545
    %v547 = vpop.xlane.xlu0 %546
    %v548 = vadd.f32 %v433, %v434
    %v549 = vadd.f32 %v548, %v435
    %550 = vadd.xlane.f32.xlu0 %v549
    %v551 = vpop.xlane.xlu0 %550
    %v552 = vadd.f32 %v436, %v437
    %v553 = vadd.f32 %v552, %v438
    %554 = vadd.xlane.f32.xlu0 %v553
    %v555 = vpop.xlane.xlu0 %554
    %v556 = vadd.f32 %v439, %v440
    %v557 = vadd.f32 %v556, %v441
    %558 = vadd.xlane.f32.xlu0 %v557
    %v559 = vpop.xlane.xlu0 %558
    %v560 = vadd.f32 %v442, %v443
    %v561 = vadd.f32 %v560, %v444
    %562 = vadd.xlane.f32.xlu0 %v561
    %v563 = vpop.xlane.xlu0 %562
    %v564 = vadd.f32 %v445, %v446
    %v565 = vadd.f32 %v564, %v447
    %566 = vadd.xlane.f32.xlu0 %v565
    %v567 = vpop.xlane.xlu0 %566
    %v568 = vadd.f32 %v448, %v449
    %v569 = vadd.f32 %v568, %v450
    %570 = vadd.xlane.f32.xlu0 %v569
    %v571 = vpop.xlane.xlu0 %570
    %v572 = vadd.f32 %v451, %v452
    %v573 = vadd.f32 %v572, %v453
    %574 = vadd.xlane.f32.xlu0 %v573
    %v575 = vpop.xlane.xlu0 %574
    %v576 = vadd.f32 %v454, %v455
    %v577 = vadd.f32 %v576, %v456
    %578 = vadd.xlane.f32.xlu0 %v577
    %v579 = vpop.xlane.xlu0 %578
    %v580 = vadd.f32 %v457, %v458
    %v581 = vadd.f32 %v580, %v459
    %582 = vadd.xlane.f32.xlu0 %v581
    %v583 = vpop.xlane.xlu0 %582
    %v584 = vadd.f32 %v460, %v461
    %v585 = vadd.f32 %v584, %v462
    %586 = vadd.xlane.f32.xlu0 %v585
    %v587 = vpop.xlane.xlu0 %586
    %v588 = vadd.f32 %v463, %v464
    %v589 = vadd.f32 %v588, %v465
    %590 = vadd.xlane.f32.xlu0 %v589
    %v591 = vpop.xlane.xlu0 %590
    %v592 = vadd.f32 %v466, %v467
    %v593 = vadd.f32 %v592, %v468
    %594 = vadd.xlane.f32.xlu0 %v593
    %v595 = vpop.xlane.xlu0 %594
    %v596 = vadd.f32 %v469, %v470
    %v597 = vadd.f32 %v596, %v471
    %598 = vadd.xlane.f32.xlu0 %v597
    %v599 = vpop.xlane.xlu0 %598
    %v600 = vmul.f32 %v475, %v247
    %v601 = vmul.f32 %v479, %v247
    %v602 = vmul.f32 %v483, %v247
    %v603 = vmul.f32 %v487, %v247
    %v604 = vmul.f32 %v491, %v247
    %v605 = vmul.f32 %v495, %v247
    %v606 = vmul.f32 %v499, %v247
    %v607 = vmul.f32 %v503, %v247
    %v608 = vmul.f32 %v507, %v247
    %v609 = vmul.f32 %v511, %v247
    %v610 = vmul.f32 %v515, %v247
    %v611 = vmul.f32 %v519, %v247
    %v612 = vmul.f32 %v523, %v247
    %v613 = vmul.f32 %v527, %v247
    %v614 = vmul.f32 %v531, %v247
    %v615 = vmul.f32 %v535, %v247
    %v616 = vmul.f32 %v539, %v247
    %v617 = vmul.f32 %v543, %v247
    %v618 = vmul.f32 %v547, %v247
    %v619 = vmul.f32 %v551, %v247
    %v620 = vmul.f32 %v555, %v247
    %v621 = vmul.f32 %v559, %v247
    %v622 = vmul.f32 %v563, %v247
    %v623 = vmul.f32 %v567, %v247
    %v624 = vmul.f32 %v571, %v247
    %v625 = vmul.f32 %v575, %v247
    %v626 = vmul.f32 %v579, %v247
    %v627 = vmul.f32 %v583, %v247
    %v628 = vmul.f32 %v587, %v247
    %v629 = vmul.f32 %v591, %v247
    %v630 = vmul.f32 %v595, %v247
    %v631 = vmul.f32 %v599, %v247
    %v632 = vadd.f32 %v600, 1e-05
    %v633 = vadd.f32 %v601, 1e-05
    %v634 = vadd.f32 %v602, 1e-05
    %v635 = vadd.f32 %v603, 1e-05
    %v636 = vadd.f32 %v604, 1e-05
    %v637 = vadd.f32 %v605, 1e-05
    %v638 = vadd.f32 %v606, 1e-05
    %v639 = vadd.f32 %v607, 1e-05
    %v640 = vadd.f32 %v608, 1e-05
    %v641 = vadd.f32 %v609, 1e-05
    %v642 = vadd.f32 %v610, 1e-05
    %v643 = vadd.f32 %v611, 1e-05
    %v644 = vadd.f32 %v612, 1e-05
    %v645 = vadd.f32 %v613, 1e-05
    %v646 = vadd.f32 %v614, 1e-05
    %v647 = vadd.f32 %v615, 1e-05
    %v648 = vadd.f32 %v616, 1e-05
    %v649 = vadd.f32 %v617, 1e-05
    %v650 = vadd.f32 %v618, 1e-05
    %v651 = vadd.f32 %v619, 1e-05
    %v652 = vadd.f32 %v620, 1e-05
    %v653 = vadd.f32 %v621, 1e-05
    %v654 = vadd.f32 %v622, 1e-05
    %v655 = vadd.f32 %v623, 1e-05
    %v656 = vadd.f32 %v624, 1e-05
    %v657 = vadd.f32 %v625, 1e-05
    %v658 = vadd.f32 %v626, 1e-05
    %v659 = vadd.f32 %v627, 1e-05
    %v660 = vadd.f32 %v628, 1e-05
    %v661 = vadd.f32 %v629, 1e-05
    %v662 = vadd.f32 %v630, 1e-05
    %v663 = vadd.f32 %v631, 1e-05
    %v664 = vrsqrt.pop %v632
    %v665 = vrsqrt.pop %v633
    %v666 = vrsqrt.pop %v634
    %v667 = vrsqrt.pop %v635
    %v668 = vrsqrt.pop %v636
    %v669 = vrsqrt.pop %v637
    %v670 = vrsqrt.pop %v638
    %v671 = vrsqrt.pop %v639
    %v672 = vrsqrt.pop %v640
    %v673 = vrsqrt.pop %v641
    %v674 = vrsqrt.pop %v642
    %v675 = vrsqrt.pop %v643
    %v676 = vrsqrt.pop %v644
    %v677 = vrsqrt.pop %v645
    %v678 = vrsqrt.pop %v646
    %v679 = vrsqrt.pop %v647
    %v680 = vrsqrt.pop %v648
    %v681 = vrsqrt.pop %v649
    %v682 = vrsqrt.pop %v650
    %v683 = vrsqrt.pop %v651
    %v684 = vrsqrt.pop %v652
    %v685 = vrsqrt.pop %v653
    %v686 = vrsqrt.pop %v654
    %v687 = vrsqrt.pop %v655
    %v688 = vrsqrt.pop %v656
    %v689 = vrsqrt.pop %v657
    %v690 = vrsqrt.pop %v658
    %v691 = vrsqrt.pop %v659
    %v692 = vrsqrt.pop %v660
    %v693 = vrsqrt.pop %v661
    %v694 = vrsqrt.pop %v662
    %v695 = vrsqrt.pop %v663
    %v696 = vmul.f32 %v280, %v664
    %v697 = vmul.f32 %v281, %v664
    %v698 = vmul.f32 %v282, %v664
    %v699 = vmul.f32 %v283, %v665
    %v700 = vmul.f32 %v284, %v665
    %v701 = vmul.f32 %v285, %v665
    %v702 = vmul.f32 %v286, %v666
    %v703 = vmul.f32 %v287, %v666
    %v704 = vmul.f32 %v288, %v666
    %v705 = vmul.f32 %v289, %v667
    %v706 = vmul.f32 %v290, %v667
    %v707 = vmul.f32 %v291, %v667
    %v708 = vmul.f32 %v292, %v668
    %v709 = vmul.f32 %v293, %v668
    %v710 = vmul.f32 %v294, %v668
    %v711 = vmul.f32 %v295, %v669
    %v712 = vmul.f32 %v296, %v669
    %v713 = vmul.f32 %v297, %v669
    %v714 = vmul.f32 %v298, %v670
    %v715 = vmul.f32 %v299, %v670
    %v716 = vmul.f32 %v300, %v670
    %v717 = vmul.f32 %v301, %v671
    %v718 = vmul.f32 %v302, %v671
    %v719 = vmul.f32 %v303, %v671
    %v720 = vmul.f32 %v304, %v672
    %v721 = vmul.f32 %v305, %v672
    %v722 = vmul.f32 %v306, %v672
    %v723 = vmul.f32 %v307, %v673
    %v724 = vmul.f32 %v308, %v673
    %v725 = vmul.f32 %v309, %v673
    %v726 = vmul.f32 %v310, %v674
    %v727 = vmul.f32 %v311, %v674
    %v728 = vmul.f32 %v312, %v674
    %v729 = vmul.f32 %v313, %v675
    %v730 = vmul.f32 %v314, %v675
    %v731 = vmul.f32 %v315, %v675
    %v732 = vmul.f32 %v316, %v676
    %v733 = vmul.f32 %v317, %v676
    %v734 = vmul.f32 %v318, %v676
    %v735 = vmul.f32 %v319, %v677
    %v736 = vmul.f32 %v320, %v677
    %v737 = vmul.f32 %v321, %v677
    %v738 = vmul.f32 %v322, %v678
    %v739 = vmul.f32 %v323, %v678
    %v740 = vmul.f32 %v324, %v678
    %v741 = vmul.f32 %v325, %v679
    %v742 = vmul.f32 %v326, %v679
    %v743 = vmul.f32 %v327, %v679
    %v744 = vmul.f32 %v328, %v680
    %v745 = vmul.f32 %v329, %v680
    %v746 = vmul.f32 %v330, %v680
    %v747 = vmul.f32 %v331, %v681
    %v748 = vmul.f32 %v332, %v681
    %v749 = vmul.f32 %v333, %v681
    %v750 = vmul.f32 %v334, %v682
    %v751 = vmul.f32 %v335, %v682
    %v752 = vmul.f32 %v336, %v682
    %v753 = vmul.f32 %v337, %v683
    %v754 = vmul.f32 %v338, %v683
    %v755 = vmul.f32 %v339, %v683
    %v756 = vmul.f32 %v340, %v684
    %v757 = vmul.f32 %v341, %v684
    %v758 = vmul.f32 %v342, %v684
    %v759 = vmul.f32 %v343, %v685
    %v760 = vmul.f32 %v344, %v685
    %v761 = vmul.f32 %v345, %v685
    %v762 = vmul.f32 %v346, %v686
    %v763 = vmul.f32 %v347, %v686
    %v764 = vmul.f32 %v348, %v686
    %v765 = vmul.f32 %v349, %v687
    %v766 = vmul.f32 %v350, %v687
    %v767 = vmul.f32 %v351, %v687
    %v768 = vmul.f32 %v352, %v688
    %v769 = vmul.f32 %v353, %v688
    %v770 = vmul.f32 %v354, %v688
    %v771 = vmul.f32 %v355, %v689
    %v772 = vmul.f32 %v356, %v689
    %v773 = vmul.f32 %v357, %v689
    %v774 = vmul.f32 %v358, %v690
    %v775 = vmul.f32 %v359, %v690
    %v776 = vmul.f32 %v360, %v690
    %v777 = vmul.f32 %v361, %v691
    %v778 = vmul.f32 %v362, %v691
    %v779 = vmul.f32 %v363, %v691
    %v780 = vmul.f32 %v364, %v692
    %v781 = vmul.f32 %v365, %v692
    %v782 = vmul.f32 %v366, %v692
    %v783 = vmul.f32 %v367, %v693
    %v784 = vmul.f32 %v368, %v693
    %v785 = vmul.f32 %v369, %v693
    %v786 = vmul.f32 %v370, %v694
    %v787 = vmul.f32 %v371, %v694
    %v788 = vmul.f32 %v372, %v694
    %v789 = vmul.f32 %v373, %v695
    %v790 = vmul.f32 %v374, %v695
    %v791 = vmul.f32 %v375, %v695
    %v792 = vpack.c.bf16 %v699, %v696
    %v793 = vpack.c.bf16 %v700, %v697
    %v794 = vpack.c.bf16 %v701, %v698
    %v795 = vpack.c.bf16 %v705, %v702
    %v796 = vpack.c.bf16 %v706, %v703
    %v797 = vpack.c.bf16 %v707, %v704
    %v798 = vpack.c.bf16 %v711, %v708
    %v799 = vpack.c.bf16 %v712, %v709
    %v800 = vpack.c.bf16 %v713, %v710
    %v801 = vpack.c.bf16 %v717, %v714
    %v802 = vpack.c.bf16 %v718, %v715
    %v803 = vpack.c.bf16 %v719, %v716
    %v804 = vpack.c.bf16 %v723, %v720
    %v805 = vpack.c.bf16 %v724, %v721
    %v806 = vpack.c.bf16 %v725, %v722
    %v807 = vpack.c.bf16 %v729, %v726
    %v808 = vpack.c.bf16 %v730, %v727
    %v809 = vpack.c.bf16 %v731, %v728
    %v810 = vpack.c.bf16 %v735, %v732
    %v811 = vpack.c.bf16 %v736, %v733
    %v812 = vpack.c.bf16 %v737, %v734
    %v813 = vpack.c.bf16 %v741, %v738
    %v814 = vpack.c.bf16 %v742, %v739
    %v815 = vpack.c.bf16 %v743, %v740
    %v816 = vpack.c.bf16 %v747, %v744
    %v817 = vpack.c.bf16 %v748, %v745
    %v818 = vpack.c.bf16 %v749, %v746
    %v819 = vpack.c.bf16 %v753, %v750
    %v820 = vpack.c.bf16 %v754, %v751
    %v821 = vpack.c.bf16 %v755, %v752
    %v822 = vpack.c.bf16 %v759, %v756
    %v823 = vpack.c.bf16 %v760, %v757
    %v824 = vpack.c.bf16 %v761, %v758
    %v825 = vpack.c.bf16 %v765, %v762
    %v826 = vpack.c.bf16 %v766, %v763
    %v827 = vpack.c.bf16 %v767, %v764
    %v828 = vpack.c.bf16 %v771, %v768
    %v829 = vpack.c.bf16 %v772, %v769
    %v830 = vpack.c.bf16 %v773, %v770
    %v831 = vpack.c.bf16 %v777, %v774
    %v832 = vpack.c.bf16 %v778, %v775
    %v833 = vpack.c.bf16 %v779, %v776
    %v834 = vpack.c.bf16 %v783, %v780
    %v835 = vpack.c.bf16 %v784, %v781
    %v836 = vpack.c.bf16 %v785, %v782
    %v837 = vpack.c.bf16 %v789, %v786
    %v838 = vpack.c.bf16 %v790, %v787
    %v839 = vpack.c.bf16 %v791, %v788
    %v888 = vunpack.c.l.b16 %v792
    %v889 = vunpack.c.l.b16 %v793
    %v890 = vunpack.c.l.b16 %v794
    %v891 = vunpack.c.h.b16 %v792
    %v892 = vunpack.c.h.b16 %v793
    %v893 = vunpack.c.h.b16 %v794
    %v894 = vunpack.c.l.b16 %v795
    %v895 = vunpack.c.l.b16 %v796
    %v896 = vunpack.c.l.b16 %v797
    %v897 = vunpack.c.h.b16 %v795
    %v898 = vunpack.c.h.b16 %v796
    %v899 = vunpack.c.h.b16 %v797
    %v900 = vunpack.c.l.b16 %v798
    %v901 = vunpack.c.l.b16 %v799
    %v902 = vunpack.c.l.b16 %v800
    %v903 = vunpack.c.h.b16 %v798
    %v904 = vunpack.c.h.b16 %v799
    %v905 = vunpack.c.h.b16 %v800
    %v906 = vunpack.c.l.b16 %v801
    %v907 = vunpack.c.l.b16 %v802
    %v908 = vunpack.c.l.b16 %v803
    %v909 = vunpack.c.h.b16 %v801
    %v910 = vunpack.c.h.b16 %v802
    %v911 = vunpack.c.h.b16 %v803
    %v912 = vunpack.c.l.b16 %v804
    %v913 = vunpack.c.l.b16 %v805
    %v914 = vunpack.c.l.b16 %v806
    %v915 = vunpack.c.h.b16 %v804
    %v916 = vunpack.c.h.b16 %v805
    %v917 = vunpack.c.h.b16 %v806
    %v918 = vunpack.c.l.b16 %v807
    %v919 = vunpack.c.l.b16 %v808
    %v920 = vunpack.c.l.b16 %v809
    %v921 = vunpack.c.h.b16 %v807
    %v922 = vunpack.c.h.b16 %v808
    %v923 = vunpack.c.h.b16 %v809
    %v924 = vunpack.c.l.b16 %v810
    %v925 = vunpack.c.l.b16 %v811
    %v926 = vunpack.c.l.b16 %v812
    %v927 = vunpack.c.h.b16 %v810
    %v928 = vunpack.c.h.b16 %v811
    %v929 = vunpack.c.h.b16 %v812
    %v930 = vunpack.c.l.b16 %v813
    %v931 = vunpack.c.l.b16 %v814
    %v932 = vunpack.c.l.b16 %v815
    %v933 = vunpack.c.h.b16 %v813
    %v934 = vunpack.c.h.b16 %v814
    %v935 = vunpack.c.h.b16 %v815
    %v936 = vunpack.c.l.b16 %v816
    %v937 = vunpack.c.l.b16 %v817
    %v938 = vunpack.c.l.b16 %v818
    %v939 = vunpack.c.h.b16 %v816
    %v940 = vunpack.c.h.b16 %v817
    %v941 = vunpack.c.h.b16 %v818
    %v942 = vunpack.c.l.b16 %v819
    %v943 = vunpack.c.l.b16 %v820
    %v944 = vunpack.c.l.b16 %v821
    %v945 = vunpack.c.h.b16 %v819
    %v946 = vunpack.c.h.b16 %v820
    %v947 = vunpack.c.h.b16 %v821
    %v948 = vunpack.c.l.b16 %v822
    %v949 = vunpack.c.l.b16 %v823
    %v950 = vunpack.c.l.b16 %v824
    %v951 = vunpack.c.h.b16 %v822
    %v952 = vunpack.c.h.b16 %v823
    %v953 = vunpack.c.h.b16 %v824
    %v954 = vunpack.c.l.b16 %v825
    %v955 = vunpack.c.l.b16 %v826
    %v956 = vunpack.c.l.b16 %v827
    %v957 = vunpack.c.h.b16 %v825
    %v958 = vunpack.c.h.b16 %v826
    %v959 = vunpack.c.h.b16 %v827
    %v960 = vunpack.c.l.b16 %v828
    %v961 = vunpack.c.l.b16 %v829
    %v962 = vunpack.c.l.b16 %v830
    %v963 = vunpack.c.h.b16 %v828
    %v964 = vunpack.c.h.b16 %v829
    %v965 = vunpack.c.h.b16 %v830
    %v966 = vunpack.c.l.b16 %v831
    %v967 = vunpack.c.l.b16 %v832
    %v968 = vunpack.c.l.b16 %v833
    %v969 = vunpack.c.h.b16 %v831
    %v970 = vunpack.c.h.b16 %v832
    %v971 = vunpack.c.h.b16 %v833
    %v972 = vunpack.c.l.b16 %v834
    %v973 = vunpack.c.l.b16 %v835
    %v974 = vunpack.c.l.b16 %v836
    %v975 = vunpack.c.h.b16 %v834
    %v976 = vunpack.c.h.b16 %v835
    %v977 = vunpack.c.h.b16 %v836
    %v978 = vunpack.c.l.b16 %v837
    %v979 = vunpack.c.l.b16 %v838
    %v980 = vunpack.c.l.b16 %v839
    %v981 = vunpack.c.h.b16 %v837
    %v982 = vunpack.c.h.b16 %v838
    %v983 = vunpack.c.h.b16 %v839
    %v984 = vpack.c.b16 %v889, %v888
    %v985 = vpack.c.b16 %v890, %v890
    %v986 = vpack.c.b16 %v892, %v891
    %v987 = vpack.c.b16 %v893, %v893
    %v988 = vpack.c.b16 %v895, %v894
    %v989 = vpack.c.b16 %v896, %v896
    %v990 = vpack.c.b16 %v898, %v897
    %v991 = vpack.c.b16 %v899, %v899
    %v992 = vpack.c.b16 %v901, %v900
    %v993 = vpack.c.b16 %v902, %v902
    %v994 = vpack.c.b16 %v904, %v903
    %v995 = vpack.c.b16 %v905, %v905
    %v996 = vpack.c.b16 %v907, %v906
    %v997 = vpack.c.b16 %v908, %v908
    %v998 = vpack.c.b16 %v910, %v909
    %v999 = vpack.c.b16 %v911, %v911
    %v1000 = vpack.c.b16 %v913, %v912
    %v1001 = vpack.c.b16 %v914, %v914
    %v1002 = vpack.c.b16 %v916, %v915
    %v1003 = vpack.c.b16 %v917, %v917
    %v1004 = vpack.c.b16 %v919, %v918
    %v1005 = vpack.c.b16 %v920, %v920
    %v1006 = vpack.c.b16 %v922, %v921
    %v1007 = vpack.c.b16 %v923, %v923
    %v1008 = vpack.c.b16 %v925, %v924
    %v1009 = vpack.c.b16 %v926, %v926
    %v1010 = vpack.c.b16 %v928, %v927
    %v1011 = vpack.c.b16 %v929, %v929
    %v1012 = vpack.c.b16 %v931, %v930
    %v1013 = vpack.c.b16 %v932, %v932
    %v1014 = vpack.c.b16 %v934, %v933
    %v1015 = vpack.c.b16 %v935, %v935
    %v1016 = vpack.c.b16 %v937, %v936
    %v1017 = vpack.c.b16 %v938, %v938
    %v1018 = vpack.c.b16 %v940, %v939
    %v1019 = vpack.c.b16 %v941, %v941
    %v1020 = vpack.c.b16 %v943, %v942
    %v1021 = vpack.c.b16 %v944, %v944
    %v1022 = vpack.c.b16 %v946, %v945
    %v1023 = vpack.c.b16 %v947, %v947
    %v1024 = vpack.c.b16 %v949, %v948
    %v1025 = vpack.c.b16 %v950, %v950
    %v1026 = vpack.c.b16 %v952, %v951
    %v1027 = vpack.c.b16 %v953, %v953
    %v1028 = vpack.c.b16 %v955, %v954
    %v1029 = vpack.c.b16 %v956, %v956
    %v1030 = vpack.c.b16 %v958, %v957
    %v1031 = vpack.c.b16 %v959, %v959
    %v1032 = vpack.c.b16 %v961, %v960
    %v1033 = vpack.c.b16 %v962, %v962
    %v1034 = vpack.c.b16 %v964, %v963
    %v1035 = vpack.c.b16 %v965, %v965
    %v1036 = vpack.c.b16 %v967, %v966
    %v1037 = vpack.c.b16 %v968, %v968
    %v1038 = vpack.c.b16 %v970, %v969
    %v1039 = vpack.c.b16 %v971, %v971
    %v1040 = vpack.c.b16 %v973, %v972
    %v1041 = vpack.c.b16 %v974, %v974
    %v1042 = vpack.c.b16 %v976, %v975
    %v1043 = vpack.c.b16 %v977, %v977
    %v1044 = vpack.c.b16 %v979, %v978
    %v1045 = vpack.c.b16 %v980, %v980
    %v1046 = vpack.c.b16 %v982, %v981
    %v1047 = vpack.c.b16 %v983, %v983
    %1112 = vst [vmem:[#allocation5] sm:$0xff] %v984
    %1113 = vst [vmem:[#allocation5 + $0x8] sm:$0xf] %v985
    %1114 = vst [vmem:[#allocation5 + $0xc] sm:$0xff] %v986
    %1115 = vst [vmem:[#allocation5 + $0x14] sm:$0xf] %v987
    %1116 = vst [vmem:[#allocation5 + $0x18] sm:$0xff] %v988
    %1117 = vst [vmem:[#allocation5 + $0x20] sm:$0xf] %v989
    %1118 = vst [vmem:[#allocation5 + $0x24] sm:$0xff] %v990
    %1119 = vst [vmem:[#allocation5 + $0x2c] sm:$0xf] %v991
    %1120 = vst [vmem:[#allocation5 + $0x30] sm:$0xff] %v992
    %1121 = vst [vmem:[#allocation5 + $0x38] sm:$0xf] %v993
    %1122 = vst [vmem:[#allocation5 + $0x3c] sm:$0xff] %v994
    %1123 = vst [vmem:[#allocation5 + $0x44] sm:$0xf] %v995
    %1124 = vst [vmem:[#allocation5 + $0x48] sm:$0xff] %v996
    %1125 = vst [vmem:[#allocation5 + $0x50] sm:$0xf] %v997
    %1126 = vst [vmem:[#allocation5 + $0x54] sm:$0xff] %v998
    %1127 = vst [vmem:[#allocation5 + $0x5c] sm:$0xf] %v999
    %1128 = vst [vmem:[#allocation5 + $0x60] sm:$0xff] %v1000
    %1129 = vst [vmem:[#allocation5 + $0x68] sm:$0xf] %v1001
    %1130 = vst [vmem:[#allocation5 + $0x6c] sm:$0xff] %v1002
    %1131 = vst [vmem:[#allocation5 + $0x74] sm:$0xf] %v1003
    %1132 = vst [vmem:[#allocation5 + $0x78] sm:$0xff] %v1004
    %1133 = vst [vmem:[#allocation5 + $0x80] sm:$0xf] %v1005
    %1134 = vst [vmem:[#allocation5 + $0x84] sm:$0xff] %v1006
    %1135 = vst [vmem:[#allocation5 + $0x8c] sm:$0xf] %v1007
    %1136 = vst [vmem:[#allocation5 + $0x90] sm:$0xff] %v1008
    %1137 = vst [vmem:[#allocation5 + $0x98] sm:$0xf] %v1009
    %1138 = vst [vmem:[#allocation5 + $0x9c] sm:$0xff] %v1010
    %1139 = vst [vmem:[#allocation5 + $0xa4] sm:$0xf] %v1011
    %1140 = vst [vmem:[#allocation5 + $0xa8] sm:$0xff] %v1012
    %1141 = vst [vmem:[#allocation5 + $0xb0] sm:$0xf] %v1013
    %1142 = vst [vmem:[#allocation5 + $0xb4] sm:$0xff] %v1014
    %1143 = vst [vmem:[#allocation5 + $0xbc] sm:$0xf] %v1015
    %1144 = vst [vmem:[#allocation5 + $0xc0] sm:$0xff] %v1016
    %1145 = vst [vmem:[#allocation5 + $0xc8] sm:$0xf] %v1017
    %1146 = vst [vmem:[#allocation5 + $0xcc] sm:$0xff] %v1018
    %1147 = vst [vmem:[#allocation5 + $0xd4] sm:$0xf] %v1019
    %1148 = vst [vmem:[#allocation5 + $0xd8] sm:$0xff] %v1020
    %1149 = vst [vmem:[#allocation5 + $0xe0] sm:$0xf] %v1021
    %1150 = vst [vmem:[#allocation5 + $0xe4] sm:$0xff] %v1022
    %1151 = vst [vmem:[#allocation5 + $0xec] sm:$0xf] %v1023
    %1152 = vst [vmem:[#allocation5 + $0xf0] sm:$0xff] %v1024
    %1153 = vst [vmem:[#allocation5 + $0xf8] sm:$0xf] %v1025
    %1154 = vst [vmem:[#allocation5 + $0xfc] sm:$0xff] %v1026
    %1155 = vst [vmem:[#allocation5 + $0x104] sm:$0xf] %v1027
    %1156 = vst [vmem:[#allocation5 + $0x108] sm:$0xff] %v1028
    %1157 = vst [vmem:[#allocation5 + $0x110] sm:$0xf] %v1029
    %1158 = vst [vmem:[#allocation5 + $0x114] sm:$0xff] %v1030
    %1159 = vst [vmem:[#allocation5 + $0x11c] sm:$0xf] %v1031
    %1160 = vst [vmem:[#allocation5 + $0x120] sm:$0xff] %v1032
    %1161 = vst [vmem:[#allocation5 + $0x128] sm:$0xf] %v1033
    %1162 = vst [vmem:[#allocation5 + $0x12c] sm:$0xff] %v1034
    %1163 = vst [vmem:[#allocation5 + $0x134] sm:$0xf] %v1035
    %1164 = vst [vmem:[#allocation5 + $0x138] sm:$0xff] %v1036
    %1165 = vst [vmem:[#allocation5 + $0x140] sm:$0xf] %v1037
    %1166 = vst [vmem:[#allocation5 + $0x144] sm:$0xff] %v1038
    %1167 = vst [vmem:[#allocation5 + $0x14c] sm:$0xf] %v1039
    %1168 = vst [vmem:[#allocation5 + $0x150] sm:$0xff] %v1040
    %1169 = vst [vmem:[#allocation5 + $0x158] sm:$0xf] %v1041
    %1170 = vst [vmem:[#allocation5 + $0x15c] sm:$0xff] %v1042
    %1171 = vst [vmem:[#allocation5 + $0x164] sm:$0xf] %v1043
    %1172 = vst [vmem:[#allocation5 + $0x168] sm:$0xff] %v1044
    %1173 = vst [vmem:[#allocation5 + $0x170] sm:$0xf] %v1045
    %1174 = vst [vmem:[#allocation5 + $0x174] sm:$0xff] %v1046
    %1175 = vst [vmem:[#allocation5 + $0x17c] sm:$0xf] %v1047
    // Predicated region
    $region10: #{tpu_custom_call.1} parent=1 // pred_check
      _
    $region11: #{tpu_custom_call.1} parent=1 // pred_check_branch
      %1177 = sbr.rel (0) target = $region13
    $region12: #{tpu_custom_call.1} parent=1 // pred_region
      %s1179 = ssub.s32 6144, 6144
      %1180 = vsyncadd [#allocation4], %s1179
      %s1181 = sshll.u32 [#allocation5], 4
      %s1182 = int_to_ptr.vmem [resolvable:$true] %s1181
      %1187 = dma.vmem_to_hbm [thread:$0]  %s1182, 6144, %s1, [#allocation4], 192, 192, 12
    $region13: #{tpu_custom_call.1} parent=1 // pred_fallthru
      _
    // Predicated region
    $region14: #{tpu_custom_call.1} parent=1 // pred_check
      _
    $region15: #{tpu_custom_call.1} parent=1 // pred_check_branch
      %1189 = sbr.rel (0) target = $region17
    $region16: #{tpu_custom_call.1} parent=1 // pred_region
      %1190 = dma.done [#allocation4], 6144
    $region17: #{tpu_custom_call.1} parent=1 // pred_fallthru
      _
    %1191 = vsyncpa [#allocation3], 1
    %1192 = vsyncpa [#allocation4], 1

</llo_original>
